<compile_context>
chip_gen: v7x
topology: tpu7x:2x2x1
jax: 0.10.0
libtpu: 0.0.40
codegen_flags: <defaults>
</compile_context>

<pallas_src>
import functools

import jax
import jax.numpy as jnp
from jax.experimental import pallas as pl
from jax.experimental.pallas import tpu as pltpu

LANES = 128
TILE_R_MAX = 1024      # 1024 x 128 x 4B = 512 KiB per f32 input block
NUM_CHUNKS = 2         # leading "parallel" axis (exploits both TCs on v7x)


def _round_up(x, m):
    return (x + m - 1) // m * m


def _masked_mse_kernel(p_ref, t_ref, m_ref, sse_out, cnt_out,
                       acc_sse, acc_cnt, *, rows, tile_r, inner):
    c = pl.program_id(0)   # parallel chunk
    i = pl.program_id(1)   # sequential reduction step within chunk

    @pl.when(i == 0)
    def _():
        acc_sse[...] = jnp.zeros_like(acc_sse)
        acc_cnt[...] = jnp.zeros_like(acc_cnt)

    p = p_ref[...].astype(jnp.float32)
    t = t_ref[...].astype(jnp.float32)
    m = m_ref[...].astype(jnp.float32)

    # Rows actually covered by this (possibly ragged / fully-OOB) block.
    row0 = (c * inner + i) * tile_r
    row_idx = jax.lax.broadcasted_iota(jnp.int32, (tile_r, LANES), 0) + row0
    valid = (row_idx < rows) & (m == 1.0)

    d = p - t
    sq = jnp.where(valid, d * d, 0.0)
    sel = jnp.where(valid, 1.0, 0.0)

    # (tile_r, 128) -> (tile_r//8, 8, 128), sum only the leading axis:
    # pure vreg adds on the VPU, no cross-lane (XLU) work in the hot loop.
    acc_sse[...] += sq.reshape(tile_r // 8, 8, LANES).sum(axis=0)
    acc_cnt[...] += sel.reshape(tile_r // 8, 8, LANES).sum(axis=0)

    @pl.when(i == inner - 1)
    def _():
        sse_out[0] = acc_sse[...]
        cnt_out[0] = acc_cnt[...]


@jax.jit
def mask_mse_loss(pred, target, mask):
    assert pred.shape == target.shape == mask.shape
    n = pred.size

    p = pred.reshape(-1)
    t = target.reshape(-1)
    m = mask.reshape(-1)

    # Pad only when required (mask pad = 0 => excluded from both sums).
    pad = (-n) % LANES
    if pad:
        p = jnp.pad(p, (0, pad))
        t = jnp.pad(t, (0, pad))
        m = jnp.pad(m, (0, pad))

    rows = (n + pad) // LANES
    p = p.reshape(rows, LANES)
    t = t.reshape(rows, LANES)
    m = m.reshape(rows, LANES)

    tile_r = min(TILE_R_MAX, _round_up(rows, 8))
    total_blocks = pl.cdiv(rows, tile_r)
    inner = pl.cdiv(total_blocks, NUM_CHUNKS)
    max_block = total_blocks - 1

    # Clamp the block index so DMAs stay in bounds; fully-OOB chunk steps are
    # zeroed by the in-kernel row mask.
    def in_map(c, i):
        return (jnp.minimum(c * inner + i, max_block), 0)

    in_spec = pl.BlockSpec((tile_r, LANES), in_map)
    out_spec = pl.BlockSpec((1, 8, LANES), lambda c, i: (c, 0, 0))

    kernel = functools.partial(
        _masked_mse_kernel, rows=rows, tile_r=tile_r, inner=inner)

    sse, cnt = pl.pallas_call(
        kernel,
        out_shape=(
            jax.ShapeDtypeStruct((NUM_CHUNKS, 8, LANES), jnp.float32),
            jax.ShapeDtypeStruct((NUM_CHUNKS, 8, LANES), jnp.float32),
        ),
        grid_spec=pltpu.PrefetchScalarGridSpec(
            num_scalar_prefetch=0,
            grid=(NUM_CHUNKS, inner),
            in_specs=[in_spec, in_spec, in_spec],
            out_specs=(out_spec, out_spec),
            scratch_shapes=[
                pltpu.VMEM((8, LANES), jnp.float32),
                pltpu.VMEM((8, LANES), jnp.float32),
            ],
        ),
        compiler_params=pltpu.CompilerParams(
            dimension_semantics=("parallel", "arbitrary")),
    )(p, t, m)

    # Tiny final reduction (2 x 8 x 128 partials) + mean, in the wrapper.
    # NOTE: if no element has mask == 1, this is 0/0 = NaN, matching
    # F.mse_loss on an empty selection.
    return jnp.sum(sse) / jnp.sum(cnt)


def _reference(pred, target, mask):
    sel = (mask == 1).astype(jnp.float32)
    d = (pred.astype(jnp.float32) - target.astype(jnp.float32)) * sel
    return jnp.sum(d * d) / jnp.sum(sel)


if __name__ == "__main__":
    key = jax.random.PRNGKey(0)
    k1, k2, k3 = jax.random.split(key, 3)

    shape = (2, 4, 16, 16)  # NCHW, like the PyTorch module's typical inputs
    pred = jax.random.normal(k1, shape, jnp.float32)
    target = jax.random.normal(k2, shape, jnp.float32)
    mask = (jax.random.uniform(k3, shape, jnp.float32) > 0.5).astype(jnp.float32)

    out = mask_mse_loss(pred, target, mask)
    out = jax.block_until_ready(out)

    ref = _reference(pred, target, mask)
    assert jnp.allclose(out, ref, rtol=1e-5, atol=1e-6), (out, ref)

    print("KERNEL_OK")
</pallas_src>

<mosaic_0001>
module attributes {stable_mosaic.version = 11 : i64} {
  func.func @_masked_mse_kernel(%arg0: i32, %arg1: i32, %arg2: memref<16x128xf32, #tpu.memory_space<vmem>>, %arg3: memref<16x128xf32, #tpu.memory_space<vmem>>, %arg4: memref<16x128xf32, #tpu.memory_space<vmem>>, %arg5: memref<1x8x128xf32, #tpu.memory_space<vmem>>, %arg6: memref<1x8x128xf32, #tpu.memory_space<vmem>>, %arg7: memref<8x128xf32, #tpu.memory_space<vmem>>, %arg8: memref<8x128xf32, #tpu.memory_space<vmem>>) attributes {dimension_semantics = [#tpu.dimension_semantics<parallel>, #tpu.dimension_semantics<arbitrary>], iteration_bounds = array<i64: 2, 1>, scalar_prefetch = 0 : i64, scratch_operands = 2 : i64, tpu.core_type = #tpu.core_type<tc>, window_params = [{transform_indices = @transform_0, window_bounds = array<i64: 16, 128>}, {transform_indices = @transform_1, window_bounds = array<i64: 16, 128>}, {transform_indices = @transform_2, window_bounds = array<i64: 16, 128>}, {transform_indices = @transform_3, window_bounds = array<i64: 1, 8, 128>}, {transform_indices = @transform_4, window_bounds = array<i64: 1, 8, 128>}]} {
    %c0_i32 = arith.constant 0 : i32
    %0 = arith.cmpi eq, %arg1, %c0_i32 : i32
    %1 = arith.extui %0 : i1 to i32
    %c0_i32_0 = arith.constant 0 : i32
    %2 = arith.cmpi ne, %1, %c0_i32_0 : i32
    scf.if %2 {
      %cst_22 = arith.constant 0.000000e+00 : f32
      %37 = vector.broadcast %cst_22 : f32 to vector<8x128xf32>
      %c0_23 = arith.constant 0 : index
      %c0_24 = arith.constant 0 : index
      %38 = vector.load %arg7[%c0_23, %c0_24] : memref<8x128xf32, #tpu.memory_space<vmem>>, vector<8x128xf32>
      tpu.vector_store %arg7[%c0_23, %c0_24], %37 {strides = array<i32>} : memref<8x128xf32, #tpu.memory_space<vmem>>, vector<8x128xf32>,
      %cst_25 = arith.constant 0.000000e+00 : f32
      %39 = vector.broadcast %cst_25 : f32 to vector<8x128xf32>
      %c0_26 = arith.constant 0 : index
      %c0_27 = arith.constant 0 : index
      %40 = vector.load %arg8[%c0_26, %c0_27] : memref<8x128xf32, #tpu.memory_space<vmem>>, vector<8x128xf32>
      tpu.vector_store %arg8[%c0_26, %c0_27], %39 {strides = array<i32>} : memref<8x128xf32, #tpu.memory_space<vmem>>, vector<8x128xf32>,
    } else {
    }
    %c0 = arith.constant 0 : index
    %c0_1 = arith.constant 0 : index
    %3 = vector.load %arg2[%c0, %c0_1] : memref<16x128xf32, #tpu.memory_space<vmem>>, vector<16x128xf32>
    %c0_2 = arith.constant 0 : index
    %c0_3 = arith.constant 0 : index
    %4 = vector.load %arg3[%c0_2, %c0_3] : memref<16x128xf32, #tpu.memory_space<vmem>>, vector<16x128xf32>
    %c0_4 = arith.constant 0 : index
    %c0_5 = arith.constant 0 : index
    %5 = vector.load %arg4[%c0_4, %c0_5] : memref<16x128xf32, #tpu.memory_space<vmem>>, vector<16x128xf32>
    %c1_i32 = arith.constant 1 : i32
    %6 = arith.muli %arg0, %c1_i32 : i32
    %7 = arith.addi %6, %arg1 : i32
    %c16_i32 = arith.constant 16 : i32
    %8 = arith.muli %7, %c16_i32 : i32
    %9 = tpu.iota {dimensions = array<i32: 0>} : vector<16x128xi32>
    %10 = vector.broadcast %8 : i32 to vector<16x128xi32>
    %11 = arith.addi %9, %10 : vector<16x128xi32>
    %c16_i32_6 = arith.constant 16 : i32
    %12 = vector.broadcast %c16_i32_6 : i32 to vector<16x128xi32>
    %13 = arith.cmpi slt, %11, %12 : vector<16x128xi32>
    %cst = arith.constant 1.000000e+00 : f32
    %14 = vector.broadcast %cst : f32 to vector<16x128xf32>
    %15 = arith.cmpf oeq, %5, %14 : vector<16x128xf32>
    %16 = arith.andi %13, %15 : vector<16x128xi1>
    %17 = arith.subf %3, %4 : vector<16x128xf32>
    %18 = arith.mulf %17, %17 : vector<16x128xf32>
    %cst_7 = arith.constant 0.000000e+00 : f32
    %19 = vector.broadcast %cst_7 : f32 to vector<16x128xf32>
    %20 = arith.select %16, %18, %19 : vector<16x128xi1>, vector<16x128xf32>
    %cst_8 = arith.constant 1.000000e+00 : f32
    %cst_9 = arith.constant 0.000000e+00 : f32
    %21 = vector.broadcast %cst_8 : f32 to vector<16x128xf32>
    %22 = vector.broadcast %cst_9 : f32 to vector<16x128xf32>
    %23 = arith.select %16, %21, %22 : vector<16x128xi1>, vector<16x128xf32>
    %c0_10 = arith.constant 0 : index
    %c0_11 = arith.constant 0 : index
    %24 = vector.load %arg7[%c0_10, %c0_11] : memref<8x128xf32, #tpu.memory_space<vmem>>, vector<8x128xf32>
    %25 = vector.shape_cast %20 : vector<16x128xf32> to vector<2x8x128xf32>
    %cst_12 = arith.constant dense<0.000000e+00> : vector<8x128xf32>
    %26 = vector.multi_reduction <add>, %25, %cst_12 [0] : vector<2x8x128xf32> to vector<8x128xf32>
    %27 = arith.addf %24, %26 : vector<8x128xf32>
    %c0_13 = arith.constant 0 : index
    %c0_14 = arith.constant 0 : index
    %28 = vector.load %arg7[%c0_13, %c0_14] : memref<8x128xf32, #tpu.memory_space<vmem>>, vector<8x128xf32>
    tpu.vector_store %arg7[%c0_13, %c0_14], %27 {strides = array<i32>} : memref<8x128xf32, #tpu.memory_space<vmem>>, vector<8x128xf32>,
    %c0_15 = arith.constant 0 : index
    %c0_16 = arith.constant 0 : index
    %29 = vector.load %arg8[%c0_15, %c0_16] : memref<8x128xf32, #tpu.memory_space<vmem>>, vector<8x128xf32>
    %30 = vector.shape_cast %23 : vector<16x128xf32> to vector<2x8x128xf32>
    %cst_17 = arith.constant dense<0.000000e+00> : vector<8x128xf32>
    %31 = vector.multi_reduction <add>, %30, %cst_17 [0] : vector<2x8x128xf32> to vector<8x128xf32>
    %32 = arith.addf %29, %31 : vector<8x128xf32>
    %c0_18 = arith.constant 0 : index
    %c0_19 = arith.constant 0 : index
    %33 = vector.load %arg8[%c0_18, %c0_19] : memref<8x128xf32, #tpu.memory_space<vmem>>, vector<8x128xf32>
    tpu.vector_store %arg8[%c0_18, %c0_19], %32 {strides = array<i32>} : memref<8x128xf32, #tpu.memory_space<vmem>>, vector<8x128xf32>,
    %c0_i32_20 = arith.constant 0 : i32
    %34 = arith.cmpi eq, %arg1, %c0_i32_20 : i32
    %35 = arith.extui %34 : i1 to i32
    %c0_i32_21 = arith.constant 0 : i32
    %36 = arith.cmpi ne, %35, %c0_i32_21 : i32
    scf.if %36 {
      %c0_22 = arith.constant 0 : index
      %c0_23 = arith.constant 0 : index
      %37 = vector.load %arg7[%c0_22, %c0_23] : memref<8x128xf32, #tpu.memory_space<vmem>>, vector<8x128xf32>
      %c0_24 = arith.constant 0 : index
      %c0_25 = arith.constant 0 : index
      %c0_26 = arith.constant 0 : index
      %38 = vector.load %arg5[%c0_24, %c0_25, %c0_26] : memref<1x8x128xf32, #tpu.memory_space<vmem>>, vector<1x8x128xf32>
      %39 = vector.shape_cast %38 : vector<1x8x128xf32> to vector<8x128xf32>
      %40 = vector.shape_cast %37 : vector<8x128xf32> to vector<1x8x128xf32>
      tpu.vector_store %arg5[%c0_24, %c0_25, %c0_26], %40 {strides = array<i32>} : memref<1x8x128xf32, #tpu.memory_space<vmem>>, vector<1x8x128xf32>,
      %c0_27 = arith.constant 0 : index
      %c0_28 = arith.constant 0 : index
      %41 = vector.load %arg8[%c0_27, %c0_28] : memref<8x128xf32, #tpu.memory_space<vmem>>, vector<8x128xf32>
      %c0_29 = arith.constant 0 : index
      %c0_30 = arith.constant 0 : index
      %c0_31 = arith.constant 0 : index
      %42 = vector.load %arg6[%c0_29, %c0_30, %c0_31] : memref<1x8x128xf32, #tpu.memory_space<vmem>>, vector<1x8x128xf32>
      %43 = vector.shape_cast %42 : vector<1x8x128xf32> to vector<8x128xf32>
      %44 = vector.shape_cast %41 : vector<8x128xf32> to vector<1x8x128xf32>
      tpu.vector_store %arg6[%c0_29, %c0_30, %c0_31], %44 {strides = array<i32>} : memref<1x8x128xf32, #tpu.memory_space<vmem>>, vector<1x8x128xf32>,
    } else {
    }
    return
  }
  func.func @transform_0(%arg0: i32, %arg1: i32) -> (i32, i32) {
    %c1_i32 = arith.constant 1 : i32
    %0 = arith.muli %arg0, %c1_i32 : i32
    %1 = arith.addi %0, %arg1 : i32
    %c0_i32 = arith.constant 0 : i32
    %2 = arith.minsi %1, %c0_i32 : i32
    %c0_i32_0 = arith.constant 0 : i32
    %c0_i32_1 = arith.constant 0 : i32
    return %2, %c0_i32_0 : i32, i32
  }
  func.func @transform_1(%arg0: i32, %arg1: i32) -> (i32, i32) {
    %c1_i32 = arith.constant 1 : i32
    %0 = arith.muli %arg0, %c1_i32 : i32
    %1 = arith.addi %0, %arg1 : i32
    %c0_i32 = arith.constant 0 : i32
    %2 = arith.minsi %1, %c0_i32 : i32
    %c0_i32_0 = arith.constant 0 : i32
    %c0_i32_1 = arith.constant 0 : i32
    return %2, %c0_i32_0 : i32, i32
  }
  func.func @transform_2(%arg0: i32, %arg1: i32) -> (i32, i32) {
    %c1_i32 = arith.constant 1 : i32
    %0 = arith.muli %arg0, %c1_i32 : i32
    %1 = arith.addi %0, %arg1 : i32
    %c0_i32 = arith.constant 0 : i32
    %2 = arith.minsi %1, %c0_i32 : i32
    %c0_i32_0 = arith.constant 0 : i32
    %c0_i32_1 = arith.constant 0 : i32
    return %2, %c0_i32_0 : i32, i32
  }
  func.func @transform_3(%arg0: i32, %arg1: i32) -> (i32, i32, i32) {
    %c0_i32 = arith.constant 0 : i32
    %c0_i32_0 = arith.constant 0 : i32
    %c0_i32_1 = arith.constant 0 : i32
    return %arg0, %c0_i32, %c0_i32_0 : i32, i32, i32
  }
  func.func @transform_4(%arg0: i32, %arg1: i32) -> (i32, i32, i32) {
    %c0_i32 = arith.constant 0 : i32
    %c0_i32_0 = arith.constant 0 : i32
    %c0_i32_1 = arith.constant 0 : i32
    return %arg0, %c0_i32, %c0_i32_0 : i32, i32, i32
  }
}

</mosaic_0001>

<llo_original>
// kernel: mask_mse_loss.1
$region0: #{mask_mse_loss.1}
  #allocation0 [shape = 'u32[]', space=smem, size = 0x4, offset = 0x4, fixed_abs, tag = 'smem constant byte address 0x4 - core index']
  #allocation1 [shape = 'u32[144,128]{1,0:T(1,128)}', space=vmem, size = 0x12000, scoped, tag = 'internal scratch']
  #allocation2 [shape = 'f32[8,128]{1,0:T(8,128)}', space=vmem, size = 0x1000, scoped, tag = 'scratch operand']
  #allocation3 [shape = 'f32[8,128]{1,0:T(8,128)}', space=vmem, size = 0x1000, scoped, tag = 'scratch operand']
  %s0 = inlined_call_operand.vmem [shape: f32[16,128], index: 0, kind: input, shape index: {}]
  %s1 = inlined_call_operand.vmem [shape: f32[16,128], index: 1, kind: input, shape index: {}]
  %s2 = inlined_call_operand.vmem [shape: f32[16,128], index: 2, kind: input, shape index: {}]
  %s3 = inlined_call_operand.vmem [shape: f32[2,8,128], index: 3, kind: output, shape index: {0}]
  %s4 = inlined_call_operand.vmem [shape: f32[2,8,128], index: 4, kind: output, shape index: {1}]
  %5 = xla_tuple %s3, %s4
  %s6 = sld [smem:[#allocation0]]
  $region61: #{mask_mse_loss.1} parent=0
    _
  %s8 = ssub.s32 1, %s6
  %s9 = scalar_select 0, %s8, %s6
  loop: start=0, step=1, limit=4
  $region2: #{mask_mse_loss.1} parent=0 // loop_pre_header
    _
  $region3: #{mask_mse_loss.1} parent=0 // loop_header
    %s11 = sphi 0, %s15
    %p12 = scmp.ge.s32.totalorder %s11, 4
    %s18 = sphi 0, %s30
    %s19 = sphi 0, %s26
    %s20 = sphi 0, %s18
    %s21 = sphi 0, %s19
    %s22 = sphi 0, %s20
    %s23 = sphi 0, %s21
    %s39 = sphi 0, %s41
    %s42 = sphi 0, %s39
    %s43 = sphi 0, %s42
    %s59 = sphi 0, %s43
    %s71 = sphi 0, %s73
    %s74 = sphi 0, %s71
    %s75 = sphi 0, %s74
    %s91 = sphi 0, %s75
    %s103 = sphi 0, %s105
    %s106 = sphi 0, %s103
    %s107 = sphi 0, %s106
    %s123 = sphi 0, %s107
    %s129 = sphi 0, %s131
    %s132 = sphi 0, %s129
    %s133 = sphi 0, %s132
    %s149 = sphi 0, %s133
    %s155 = sphi 0, %s157
    %s158 = sphi 0, %s155
    %s159 = sphi 0, %s158
    %s175 = sphi 0, %s159
  $region4: #{mask_mse_loss.1} parent=0 // loop_header_branch
    %14 = sbr.rel (%p12) target = $region8
  $region5: #{mask_mse_loss.1} parent=0 // loop_body
    %s16 = ssub.s32 %s11, 1
    %s17 = ssub.s32 %s11, 2
    %s24 = sadd.s32 1, %s19
    %p25 = scmp.ge.s32.totalorder %s24, 1
    %s26 = scalar_select %p25, 0, %s24
    %s27 = sadd.s32 1, %s18
    %s28 = scalar_select %p25, %s27, %s18
    %p29 = scmp.ge.s32.totalorder %s28, 2
    %s30 = scalar_select %p29, 0, %s28
    %s31 = sadd.s32 %s18, %s19
    %p32 = scmp.lt.s32.totalorder %s31, 0
    %s33 = scalar_select %p32, %s31, 0
    %s34 = sadd.s32 %s30, %s26
    %p35 = scmp.lt.s32.totalorder %s34, 0
    %s36 = scalar_select %p35, %s34, 0
    %s37 = ssub.s32 %s33, %s36
    %p38 = scmp.eq.s32.totalorder %s37, 0
    %s40 = sadd.s32 %s39, 1
    %s41 = scalar_select %p38, %s39, %s40
    %p44 = pneg %p38
    %p45 = scmp.eq.s32.totalorder %s11, 1
    %p46 = por %p44, %p45
    %p47 = scmp.ne.s32.totalorder %s39, %s42
    %p48 = scmp.eq.s32.totalorder %s11, 0
    %p49 = por %p47, %p48
    %p50 = scmp.ne.s32.totalorder %s39, %s42
    %p51 = scmp.eq.s32.totalorder %s16, 1
    %p52 = por %p50, %p51
    %p53 = scmp.ne.s32.totalorder %s42, %s43
    %p54 = scmp.eq.s32.totalorder %s16, 0
    %p55 = por %p53, %p54
    %p56 = scmp.ne.s32.totalorder %s42, %s43
    %p57 = scmp.eq.s32.totalorder %s17, 1
    %p58 = por %p56, %p57
    %p60 = scmp.ne.s32.totalorder %s43, %s59
    %p61 = scmp.eq.s32.totalorder %s17, 0
    %p62 = por %p60, %p61
    %s63 = sadd.s32 %s18, %s19
    %p64 = scmp.lt.s32.totalorder %s63, 0
    %s65 = scalar_select %p64, %s63, 0
    %s66 = sadd.s32 %s30, %s26
    %p67 = scmp.lt.s32.totalorder %s66, 0
    %s68 = scalar_select %p67, %s66, 0
    %s69 = ssub.s32 %s65, %s68
    %p70 = scmp.eq.s32.totalorder %s69, 0
    %s72 = sadd.s32 %s71, 1
    %s73 = scalar_select %p70, %s71, %s72
    %p76 = pneg %p70
    %p77 = scmp.eq.s32.totalorder %s11, 1
    %p78 = por %p76, %p77
    %p79 = scmp.ne.s32.totalorder %s71, %s74
    %p80 = scmp.eq.s32.totalorder %s11, 0
    %p81 = por %p79, %p80
    %p82 = scmp.ne.s32.totalorder %s71, %s74
    %p83 = scmp.eq.s32.totalorder %s16, 1
    %p84 = por %p82, %p83
    %p85 = scmp.ne.s32.totalorder %s74, %s75
    %p86 = scmp.eq.s32.totalorder %s16, 0
    %p87 = por %p85, %p86
    %p88 = scmp.ne.s32.totalorder %s74, %s75
    %p89 = scmp.eq.s32.totalorder %s17, 1
    %p90 = por %p88, %p89
    %p92 = scmp.ne.s32.totalorder %s75, %s91
    %p93 = scmp.eq.s32.totalorder %s17, 0
    %p94 = por %p92, %p93
    %s95 = sadd.s32 %s18, %s19
    %p96 = scmp.lt.s32.totalorder %s95, 0
    %s97 = scalar_select %p96, %s95, 0
    %s98 = sadd.s32 %s30, %s26
    %p99 = scmp.lt.s32.totalorder %s98, 0
    %s100 = scalar_select %p99, %s98, 0
    %s101 = ssub.s32 %s97, %s100
    %p102 = scmp.eq.s32.totalorder %s101, 0
    %s104 = sadd.s32 %s103, 1
    %s105 = scalar_select %p102, %s103, %s104
    %p108 = pneg %p102
    %p109 = scmp.eq.s32.totalorder %s11, 1
    %p110 = por %p108, %p109
    %p111 = scmp.ne.s32.totalorder %s103, %s106
    %p112 = scmp.eq.s32.totalorder %s11, 0
    %p113 = por %p111, %p112
    %p114 = scmp.ne.s32.totalorder %s103, %s106
    %p115 = scmp.eq.s32.totalorder %s16, 1
    %p116 = por %p114, %p115
    %p117 = scmp.ne.s32.totalorder %s106, %s107
    %p118 = scmp.eq.s32.totalorder %s16, 0
    %p119 = por %p117, %p118
    %p120 = scmp.ne.s32.totalorder %s106, %s107
    %p121 = scmp.eq.s32.totalorder %s17, 1
    %p122 = por %p120, %p121
    %p124 = scmp.ne.s32.totalorder %s107, %s123
    %p125 = scmp.eq.s32.totalorder %s17, 0
    %p126 = por %p124, %p125
    %s127 = ssub.s32 %s18, %s30
    %p128 = scmp.eq.s32.totalorder %s127, 0
    %s130 = sadd.s32 %s129, 1
    %s131 = scalar_select %p128, %s129, %s130
    %p134 = pneg %p128
    %p135 = scmp.eq.s32.totalorder %s11, 1
    %p136 = por %p134, %p135
    %p137 = scmp.ne.s32.totalorder %s129, %s132
    %p138 = scmp.eq.s32.totalorder %s11, 0
    %p139 = por %p137, %p138
    %p140 = scmp.ne.s32.totalorder %s129, %s132
    %p141 = scmp.eq.s32.totalorder %s16, 1
    %p142 = por %p140, %p141
    %p143 = scmp.ne.s32.totalorder %s132, %s133
    %p144 = scmp.eq.s32.totalorder %s16, 0
    %p145 = por %p143, %p144
    %p146 = scmp.ne.s32.totalorder %s132, %s133
    %p147 = scmp.eq.s32.totalorder %s17, 1
    %p148 = por %p146, %p147
    %p150 = scmp.ne.s32.totalorder %s133, %s149
    %p151 = scmp.eq.s32.totalorder %s17, 0
    %p152 = por %p150, %p151
    %s153 = ssub.s32 %s18, %s30
    %p154 = scmp.eq.s32.totalorder %s153, 0
    %s156 = sadd.s32 %s155, 1
    %s157 = scalar_select %p154, %s155, %s156
    %p160 = pneg %p154
    %p161 = scmp.eq.s32.totalorder %s11, 1
    %p162 = por %p160, %p161
    %p163 = scmp.ne.s32.totalorder %s155, %s158
    %p164 = scmp.eq.s32.totalorder %s11, 0
    %p165 = por %p163, %p164
    %p166 = scmp.ne.s32.totalorder %s155, %s158
    %p167 = scmp.eq.s32.totalorder %s16, 1
    %p168 = por %p166, %p167
    %p169 = scmp.ne.s32.totalorder %s158, %s159
    %p170 = scmp.eq.s32.totalorder %s16, 0
    %p171 = por %p169, %p170
    %p172 = scmp.ne.s32.totalorder %s158, %s159
    %p173 = scmp.eq.s32.totalorder %s17, 1
    %p174 = por %p172, %p173
    %p176 = scmp.ne.s32.totalorder %s159, %s175
    %p177 = scmp.eq.s32.totalorder %s17, 0
    %p178 = por %p176, %p177
    %p179 = scmp.le.s32.totalorder 1, %s11
    %p180 = scmp.lt.s32.totalorder %s11, 3
    %p181 = pnand %p179, %p180
    %p182 = pneg %p181
    // Predicated region
    $region9: #{mask_mse_loss.1} parent=5 // pred_check
      _
    $region10: #{mask_mse_loss.1} parent=5 // pred_check_branch
      %184 = sbr.rel (%p181) target = $region12
    $region11: #{mask_mse_loss.1} parent=5 // pred_region
      %s185 = ssub.s32 %s11, 1
    $region12: #{mask_mse_loss.1} parent=5 // pred_fallthru
      _
    %p186 = scmp.lt.s32.totalorder %s11, 2
    // Predicated region
    $region13: #{mask_mse_loss.1} parent=5 // pred_check
      %p187 = pneg %p186
    $region14: #{mask_mse_loss.1} parent=5 // pred_check_branch
      %189 = sbr.rel (%p187) target = $region16
    $region15: #{mask_mse_loss.1} parent=5 // pred_region
      // Predicated region
      $region17: #{mask_mse_loss.1} parent=15 // pred_check
        %p190 = pneg %p49
      $region18: #{mask_mse_loss.1} parent=15 // pred_check_branch
        %192 = sbr.rel (%p190) target = $region20
      $region19: #{mask_mse_loss.1} parent=15 // pred_region
        %s193 = sadd.s32 %s18, %s19
        %p194 = scmp.lt.s32.totalorder %s193, 0
        %s195 = scalar_select %p194, %s193, 0
        %s196 = smul.u32 2, %s195
        %p197 = scmp.lt.s32.totalorder %s196, 1
        %s198 = scalar_select %p197, %s196, 1
        %s199 = smul.addr %s198, 8
        %s200 = scalar_lea.vmem %s0, %s199
        %s201 = sadd.s32 %s18, %s19
        %p202 = scmp.lt.s32.totalorder %s201, 0
        %s203 = scalar_select %p202, %s201, 0
        %s204 = smul.u32 2, %s203
      $region20: #{mask_mse_loss.1} parent=15 // pred_fallthru
        _
      // Predicated region
      $region21: #{mask_mse_loss.1} parent=15 // pred_check
        %p205 = pneg %p81
      $region22: #{mask_mse_loss.1} parent=15 // pred_check_branch
        %207 = sbr.rel (%p205) target = $region24
      $region23: #{mask_mse_loss.1} parent=15 // pred_region
        %s208 = sadd.s32 %s18, %s19
        %p209 = scmp.lt.s32.totalorder %s208, 0
        %s210 = scalar_select %p209, %s208, 0
        %s211 = smul.u32 2, %s210
        %p212 = scmp.lt.s32.totalorder %s211, 1
        %s213 = scalar_select %p212, %s211, 1
        %s214 = smul.addr %s213, 8
        %s215 = scalar_lea.vmem %s1, %s214
        %s216 = sadd.s32 %s18, %s19
        %p217 = scmp.lt.s32.totalorder %s216, 0
        %s218 = scalar_select %p217, %s216, 0
        %s219 = smul.u32 2, %s218
      $region24: #{mask_mse_loss.1} parent=15 // pred_fallthru
        _
      // Predicated region
      $region25: #{mask_mse_loss.1} parent=15 // pred_check
        %p220 = pneg %p113
      $region26: #{mask_mse_loss.1} parent=15 // pred_check_branch
        %222 = sbr.rel (%p220) target = $region28
      $region27: #{mask_mse_loss.1} parent=15 // pred_region
        %s223 = sadd.s32 %s18, %s19
        %p224 = scmp.lt.s32.totalorder %s223, 0
        %s225 = scalar_select %p224, %s223, 0
        %s226 = smul.u32 2, %s225
        %p227 = scmp.lt.s32.totalorder %s226, 1
        %s228 = scalar_select %p227, %s226, 1
        %s229 = smul.addr %s228, 8
        %s230 = scalar_lea.vmem %s2, %s229
        %s231 = sadd.s32 %s18, %s19
        %p232 = scmp.lt.s32.totalorder %s231, 0
        %s233 = scalar_select %p232, %s231, 0
        %s234 = smul.u32 2, %s233
      $region28: #{mask_mse_loss.1} parent=15 // pred_fallthru
        _
    $region16: #{mask_mse_loss.1} parent=5 // pred_fallthru
      _
    %p235 = scmp.le.s32.totalorder 1, %s11
    %p236 = scmp.lt.s32.totalorder %s11, 3
    %p237 = pnand %p235, %p236
    %p238 = pneg %p237
    // Predicated region
    $region29: #{mask_mse_loss.1} parent=5 // pred_check
      _
    $region30: #{mask_mse_loss.1} parent=5 // pred_check_branch
      %240 = sbr.rel (%p237) target = $region32
    $region31: #{mask_mse_loss.1} parent=5 // pred_region
      %s241 = ssub.s32 %s11, 1
      %s242 = sadd.s32 %s20, %s21
      %p243 = scmp.lt.s32.totalorder %s242, 0
      %s244 = scalar_select %p243, %s242, 0
      %s245 = smul.u32 2, %s244
      %p246 = scmp.lt.s32.totalorder %s245, 1
      %s247 = scalar_select %p246, %s245, 1
      %s248 = smul.addr %s247, 8
      %s249 = scalar_lea.vmem %s0, %s248
      %p250 = pneg %p55
      %p251 = pneg %p52
      %s252 = sadd.s32 %s20, %s21
      %p253 = scmp.lt.s32.totalorder %s252, 0
      %s254 = scalar_select %p253, %s252, 0
      %s255 = smul.u32 2, %s254
      %p256 = scmp.lt.s32.totalorder %s255, 1
      %s257 = scalar_select %p256, %s255, 1
      %s258 = smul.addr %s257, 8
      %s259 = scalar_lea.vmem %s1, %s258
      %p260 = pneg %p87
      %p261 = pneg %p84
      %s262 = sadd.s32 %s20, %s21
      %p263 = scmp.lt.s32.totalorder %s262, 0
      %s264 = scalar_select %p263, %s262, 0
      %s265 = smul.u32 2, %s264
      %p266 = scmp.lt.s32.totalorder %s265, 1
      %s267 = scalar_select %p266, %s265, 1
      %s268 = smul.addr %s267, 8
      %s269 = scalar_lea.vmem %s2, %s268
      %p270 = pneg %p119
      %p271 = pneg %p116
      %p272 = pneg %p145
      %p273 = pneg %p142
      %p274 = scmp.lt.s32.totalorder %s20, 1
      %s275 = scalar_select %p274, %s20, 1
      %s276 = smul.addr %s275, 8
      %s277 = scalar_lea.vmem %s3, %s276
      %p278 = pneg %p171
      %p279 = pneg %p168
      %p280 = scmp.lt.s32.totalorder %s20, 1
      %s281 = scalar_select %p280, %s20, 1
      %s282 = smul.addr %s281, 8
      %s283 = scalar_lea.vmem %s4, %s282
      %s284 = sadd.s32 %s20, %s21
      %p285 = scmp.lt.s32.totalorder %s284, 0
      %s286 = scalar_select %p285, %s284, 0
      %s287 = smul.u32 2, %s286
      %p288 = scmp.lt.s32.totalorder %s287, 1
      %s289 = scalar_select %p288, %s287, 1
      %s290 = smul.addr %s289, 8
      %s291 = scalar_lea.vmem %s0, %s290
      %s292 = sadd.s32 %s20, %s21
      %p293 = scmp.lt.s32.totalorder %s292, 0
      %s294 = scalar_select %p293, %s292, 0
      %s295 = smul.u32 2, %s294
      %s296 = sadd.s32 %s20, %s21
      %p297 = scmp.lt.s32.totalorder %s296, 0
      %s298 = scalar_select %p297, %s296, 0
      %s299 = smul.u32 2, %s298
      %p300 = scmp.lt.s32.totalorder %s299, 1
      %s301 = scalar_select %p300, %s299, 1
      %s302 = smul.addr %s301, 8
      %s303 = scalar_lea.vmem %s1, %s302
      %s304 = sadd.s32 %s20, %s21
      %p305 = scmp.lt.s32.totalorder %s304, 0
      %s306 = scalar_select %p305, %s304, 0
      %s307 = smul.u32 2, %s306
      %s308 = sadd.s32 %s20, %s21
      %p309 = scmp.lt.s32.totalorder %s308, 0
      %s310 = scalar_select %p309, %s308, 0
      %s311 = smul.u32 2, %s310
      %p312 = scmp.lt.s32.totalorder %s311, 1
      %s313 = scalar_select %p312, %s311, 1
      %s314 = smul.addr %s313, 8
      %s315 = scalar_lea.vmem %s2, %s314
      %s316 = sadd.s32 %s20, %s21
      %p317 = scmp.lt.s32.totalorder %s316, 0
      %s318 = scalar_select %p317, %s316, 0
      %s319 = smul.u32 2, %s318
      %p320 = scmp.lt.s32.totalorder %s20, 1
      %s321 = scalar_select %p320, %s20, 1
      %s322 = smul.addr %s321, 8
      %s323 = scalar_lea.vmem %s3, %s322
      %p324 = scmp.lt.s32.totalorder %s20, 1
      %s325 = scalar_select %p324, %s20, 1
      %s326 = smul.addr %s325, 8
      %s327 = scalar_lea.vmem %s4, %s326
      %p328 = scmp.eq.s32.totalorder %s21, 0
      // Predicated region
      $region33: #{mask_mse_loss.1} parent=31 // pred_check
        %p329 = pneg %p328
      $region34: #{mask_mse_loss.1} parent=31 // pred_check_branch
        %331 = sbr.rel (%p329) target = $region36
      $region35: #{mask_mse_loss.1} parent=31 // pred_region
        %332 = vst [vmem:[#allocation2] sm:$0xff] 0.0
        %333 = vst [vmem:[#allocation3] sm:$0xff] 0.0
      $region36: #{mask_mse_loss.1} parent=31 // pred_fallthru
        _
      %v334 = vld [vmem:[%s291] sm:$0xff]
      %v335 = vld [vmem:[%s291 + $0x8] sm:$0xff]
      %v336 = vld [vmem:[%s303] sm:$0xff]
      %v337 = vld [vmem:[%s303 + $0x8] sm:$0xff]
      %v338 = vld [vmem:[%s315] sm:$0xff]
      %v339 = vld [vmem:[%s315 + $0x8] sm:$0xff]
      %s340 = sadd.s32 %s20, %s21
      %s341 = smul.u32 %s340, 16
      %v342 = vlaneseq
      %v343 = vshrl.u32 %v342, 7
      %v344 = vadd.s32 %v343, 8
      %v345 = vstv %s341
      %v346 = vadd.s32 %v343, %v345
      %v347 = vadd.s32 %v344, %v345
      %vm348 = vcmp.lt.s32.totalorder %v346, 16
      %vm349 = vcmp.lt.s32.totalorder %v347, 16
      %vm350 = vcmp.eq.f32.partialorder %v338, 1.0
      %vm351 = vcmp.eq.f32.partialorder %v339, 1.0
      %vm352 = vmand %vm348, %vm350
      %vm353 = vmand %vm349, %vm351
      %v354 = vsub.f32 %v334, %v336
      %v355 = vsub.f32 %v335, %v337
      %v356 = vmul.f32 %v354, %v354
      %v357 = vmul.f32 %v355, %v355
      %v358 = vsel %vm352, %v356, 0.0
      %v359 = vsel %vm353, %v357, 0.0
      %v360 = vsel %vm352, 1.0, 0.0
      %v361 = vsel %vm353, 1.0, 0.0
      %v362 = vld [vmem:[#allocation2] sm:$0xff]
      %v363 = vadd.f32 %v358, %v359
      %v364 = vadd.f32 %v362, %v363
      %365 = vst [vmem:[#allocation2] sm:$0xff] %v364
      %v366 = vld [vmem:[#allocation3] sm:$0xff]
      %v367 = vadd.f32 %v360, %v361
      %v368 = vadd.f32 %v366, %v367
      %369 = vst [vmem:[#allocation3] sm:$0xff] %v368
      // Predicated region
      $region37: #{mask_mse_loss.1} parent=31 // pred_check
        %p370 = pneg %p328
      $region38: #{mask_mse_loss.1} parent=31 // pred_check_branch
        %372 = sbr.rel (%p370) target = $region40
      $region39: #{mask_mse_loss.1} parent=31 // pred_region
        %v373 = vld [vmem:[#allocation2] sm:$0xff]
        %374 = vst [vmem:[%s323] sm:$0xff] %v373
        %v375 = vld [vmem:[#allocation3] sm:$0xff]
        %376 = vst [vmem:[%s327] sm:$0xff] %v375
      $region40: #{mask_mse_loss.1} parent=31 // pred_fallthru
        _
      %p377 = scmp.lt.s32.totalorder %s20, 1
      %s378 = scalar_select %p377, %s20, 1
      %s379 = smul.addr %s378, 8
      %s380 = scalar_lea.vmem %s3, %s379
      %p381 = scmp.lt.s32.totalorder %s20, 1
      %s382 = scalar_select %p381, %s20, 1
      %s383 = smul.addr %s382, 8
      %s384 = scalar_lea.vmem %s4, %s383
      // Predicated region
      $region41: #{mask_mse_loss.1} parent=31 // pred_check
        %p385 = pneg %p142
      $region42: #{mask_mse_loss.1} parent=31 // pred_check_branch
        %387 = sbr.rel (%p385) target = $region44
      $region43: #{mask_mse_loss.1} parent=31 // pred_region
        _
      $region44: #{mask_mse_loss.1} parent=31 // pred_fallthru
        _
      // Predicated region
      $region45: #{mask_mse_loss.1} parent=31 // pred_check
        %p388 = pneg %p168
      $region46: #{mask_mse_loss.1} parent=31 // pred_check_branch
        %390 = sbr.rel (%p388) target = $region48
      $region47: #{mask_mse_loss.1} parent=31 // pred_region
        _
      $region48: #{mask_mse_loss.1} parent=31 // pred_fallthru
        _
    $region32: #{mask_mse_loss.1} parent=5 // pred_fallthru
      _
    %p391 = scmp.le.s32.totalorder 2, %s11
    // Predicated region
    $region49: #{mask_mse_loss.1} parent=5 // pred_check
      %p392 = pneg %p391
    $region50: #{mask_mse_loss.1} parent=5 // pred_check_branch
      %394 = sbr.rel (%p392) target = $region52
    $region51: #{mask_mse_loss.1} parent=5 // pred_region
      %s395 = ssub.s32 %s11, 2
      // Predicated region
      $region53: #{mask_mse_loss.1} parent=51 // pred_check
        %p396 = pneg %p148
      $region54: #{mask_mse_loss.1} parent=51 // pred_check_branch
        %398 = sbr.rel (%p396) target = $region56
      $region55: #{mask_mse_loss.1} parent=51 // pred_region
        %p399 = scmp.lt.s32.totalorder %s22, 1
        %s400 = scalar_select %p399, %s22, 1
        %s401 = smul.addr %s400, 8
        %s402 = scalar_lea.vmem %s3, %s401
      $region56: #{mask_mse_loss.1} parent=51 // pred_fallthru
        _
      // Predicated region
      $region57: #{mask_mse_loss.1} parent=51 // pred_check
        %p403 = pneg %p174
      $region58: #{mask_mse_loss.1} parent=51 // pred_check_branch
        %405 = sbr.rel (%p403) target = $region60
      $region59: #{mask_mse_loss.1} parent=51 // pred_region
        %p406 = scmp.lt.s32.totalorder %s22, 1
        %s407 = scalar_select %p406, %s22, 1
        %s408 = smul.addr %s407, 8
        %s409 = scalar_lea.vmem %s4, %s408
      $region60: #{mask_mse_loss.1} parent=51 // pred_fallthru
        _
    $region52: #{mask_mse_loss.1} parent=5 // pred_fallthru
      _
  $region6: #{mask_mse_loss.1} parent=0 // loop_footer
    %s15 = sadd.s32 1, %s11
  $region7: #{mask_mse_loss.1} parent=0 // loop_footer_branch
    %10 = sbr.rel target = $region3
  $region8: #{mask_mse_loss.1} parent=0 // loop_exit
    _

</llo_original>
